<compile_context>
chip_gen: v5e
topology: v5e:2x2
jax: 0.10.0
libtpu: 0.0.40
codegen_flags: <defaults>
</compile_context>

<pallas_src>
import jax
import jax.numpy as jnp
from jax import lax
from jax.experimental import pallas as pl
from jax.experimental.pallas import tpu as pltpu

INDIM = 2
HIDDEN = 1
LANE = 128        # minimum lane-tile width (batch lives on lanes)
MAX_BLOCK = 512   # max batch lanes per grid step (4 independent lane sub-tiles)
MAX_CT = 256      # max timesteps per T-chunk (bounds VMEM residency of x)


def lstm_fc_kernel(x_ref, w_ref, fcw_ref, y_ref, h_ref, c_ref):
    """
    x_ref  : (1, CT, INDIM, BLK) VMEM  one batch group's chunk of the input sequence
    w_ref  : (4, 4)              VMEM  packed columns [w_x0, w_x1, b_ih+b_hh, w_hh]
                                       (PyTorch gate order i,f,g,o; 'g' row pre-scaled by 2)
    fcw_ref: (1,)                SMEM  fc weight (scalar)
    y_ref  : (1, BLK)            VMEM  output (lane-dense), written on the last T-chunk
    h_ref  : (1, BLK)            VMEM scratch  hidden state carried across T-chunks
    c_ref  : (1, BLK)            VMEM scratch  cell   state carried across T-chunks
    """
    ct = x_ref.shape[1]
    blk = x_ref.shape[3]
    tc = pl.program_id(1)
    last_chunk = pl.num_programs(1) - 1

    @pl.when(tc == 0)
    def _():
        h_ref[...] = jnp.zeros_like(h_ref)
        c_ref[...] = jnp.zeros_like(c_ref)

    # Loop-invariant lane broadcasts, hoisted out of the recurrence (JAX doesn't CSE these).
    w = w_ref[...]                                    # (4, 4)
    w0_b = jnp.broadcast_to(w[:, 0:1], (4, blk))      # x feature 0 -> gates
    w1_b = jnp.broadcast_to(w[:, 1:2], (4, blk))      # x feature 1 -> gates
    b_b = jnp.broadcast_to(w[:, 2:3], (4, blk))       # combined bias b_ih + b_hh
    u_b = jnp.broadcast_to(w[:, 3:4], (4, blk))       # hidden -> gates
    fcw = fcw_ref[0]                                  # scalar from SMEM

    def step(t, carry):
        h, c = carry                                  # (1, blk) each
        xs = x_ref[0, t]                              # (INDIM, blk) -- x-loads have no h/c dep,
        # pre-activation computed inline: hides under the EUP latency inside the unrolled window.
        pre = xs[0:1, :] * w0_b + xs[1:2, :] * w1_b + b_b + h * u_b   # (4, blk)
        s = jax.nn.sigmoid(pre)                       # one fused EUP pass over all 4 gates
        i_g = s[0:1, :]
        f_g = s[1:2, :]
        g_g = s[2:3, :] * 2.0 - 1.0                   # tanh(z) = 2*sigmoid(2z) - 1 (z pre-scaled)
        o_g = s[3:4, :]
        c_new = f_g * c + i_g * g_g
        h_new = o_g * jnp.tanh(c_new)
        return (h_new, c_new)

    unroll = True if ct <= 32 else 16
    h, c = lax.fori_loop(0, ct, step, (h_ref[...], c_ref[...]), unroll=unroll)
    h_ref[...] = h
    c_ref[...] = c

    @pl.when(tc == last_chunk)
    def _():
        # fc: Linear(hidden=1 -> 1, bias=False): y = h_T * fc_w   (lane-dense unmasked store)
        y_ref[...] = h * fcw


def lstmsubmodel2_forward(bsize, xt, params):
    """Pallas wrapper. xt: (T, B, INDIM) f32, time-major. Returns y: (B, 1)."""
    del bsize  # batch size implied by xt's shape (h0/c0 are zeros inside the kernel)
    w_ih, w_hh, b_ih, b_hh, fc_w = params
    T, B, I = xt.shape
    assert I == INDIM

    # ---- batch tiling: batch on lanes, padded to a multiple of 128 --------------------------
    Bp = ((B + LANE - 1) // LANE) * LANE
    # Widen the per-grid-step batch block (more independent work under the serial EUP chain),
    # but keep >=2 grid steps along the "parallel" axis when possible (v7x has 2 TensorCores).
    if Bp % (2 * MAX_BLOCK) == 0:
        blk = MAX_BLOCK
    elif Bp % 512 == 0:
        blk = 256
    else:
        blk = 128
    n_groups = Bp // blk

    # ---- T chunking: stream x chunk-by-chunk, h/c carried in scratch across chunks ----------
    ct = T
    if T > MAX_CT:
        for cand in range(MAX_CT, 0, -1):
            if T % cand == 0:
                ct = cand
                break
    n_chunks = T // ct
    # TODO(synk): support a ragged last chunk (a prime T > MAX_CT currently falls back to ct=1,
    # which is correct but slow).

    # ---- single fused re-layout of x: (T, B, I) -> (G, T, I, blk), batch on lanes ------------
    # Each (g, chunk) DMA is then one contiguous slab; padded lanes see an all-zero sequence.
    x = xt.astype(jnp.float32)
    x = jnp.pad(x, ((0, 0), (0, Bp - B), (0, 0)))
    x = x.reshape(T, n_groups, blk, INDIM)
    x = jnp.transpose(x, (1, 0, 3, 2))                       # (G, T, INDIM, blk)

    # ---- pack the four tiny weight tensors into one (4, 4) array ----------------------------
    # Columns: [w_x0, w_x1, b_ih + b_hh, w_hh].  The 'g' row (index 2) is pre-scaled by 2 so the
    # kernel can compute tanh via the single fused sigmoid pass: tanh(z) = 2*sigmoid(2z) - 1.
    gscale = jnp.array([1.0, 1.0, 2.0, 1.0], jnp.float32).reshape(4, 1)
    w = w_ih.astype(jnp.float32).reshape(4, INDIM)
    u = w_hh.astype(jnp.float32).reshape(4, HIDDEN)
    b = (b_ih + b_hh).astype(jnp.float32).reshape(4, 1)
    wpack = jnp.concatenate([w[:, 0:1], w[:, 1:2], b, u], axis=1) * gscale    # (4, 4)
    fcw = fc_w.astype(jnp.float32).reshape(1)                                 # (1,) scalar

    # Explicit scoped-VMEM budget: double-buffered x chunk (INDIM=2 pads to 8 sublanes) + headroom.
    x_block_bytes = ct * 8 * blk * 4
    vmem_limit = min(max(2 * x_block_bytes + (4 << 20), 16 << 20), 64 << 20)

    y_pad = pl.pallas_call(
        lstm_fc_kernel,
        out_shape=jax.ShapeDtypeStruct((1, Bp), jnp.float32),
        grid_spec=pltpu.PrefetchScalarGridSpec(
            num_scalar_prefetch=0,
            grid=(n_groups, n_chunks),
            in_specs=[
                pl.BlockSpec((1, ct, INDIM, blk), lambda g, t: (g, t, 0, 0)),
                pl.BlockSpec((4, 4), lambda g, t: (0, 0)),
                pl.BlockSpec(memory_space=pltpu.MemorySpace.SMEM),
            ],
            out_specs=pl.BlockSpec((1, blk), lambda g, t: (0, g)),
            scratch_shapes=[
                pltpu.VMEM((1, blk), jnp.float32),   # h carried across T-chunks
                pltpu.VMEM((1, blk), jnp.float32),   # c carried across T-chunks
            ],
        ),
        compiler_params=pltpu.CompilerParams(
            dimension_semantics=("parallel", "arbitrary"),
            vmem_limit_bytes=vmem_limit),
    )(x, wpack, fcw)

    return y_pad[0, :B].reshape(B, 1)


def lstmsubmodel2_ref(xt, params):
    """Pure-JAX reference mirroring torch.nn.LSTM + Linear semantics."""
    w_ih, w_hh, b_ih, b_hh, fc_w = params
    T, B, _ = xt.shape
    h = jnp.zeros((B, HIDDEN), jnp.float32)
    c = jnp.zeros((B, HIDDEN), jnp.float32)
    for t in range(T):
        gates = xt[t] @ w_ih.T + h @ w_hh.T + b_ih + b_hh  # (B, 4)
        i = jax.nn.sigmoid(gates[:, 0:1])
        f = jax.nn.sigmoid(gates[:, 1:2])
        g = jnp.tanh(gates[:, 2:3])
        o = jax.nn.sigmoid(gates[:, 3:4])
        c = f * c + i * g
        h = o * jnp.tanh(c)
    return h @ fc_w.T


def init_params(key):
    """Deterministic init matching PyTorch shapes (uniform in [-1/sqrt(hidden), 1/sqrt(hidden)] = [-1, 1])."""
    k1, k2, k3, k4, k5 = jax.random.split(key, 5)
    w_ih = jax.random.uniform(k1, (4 * HIDDEN, INDIM), jnp.float32, -1.0, 1.0)
    w_hh = jax.random.uniform(k2, (4 * HIDDEN, HIDDEN), jnp.float32, -1.0, 1.0)
    b_ih = jax.random.uniform(k3, (4 * HIDDEN,), jnp.float32, -1.0, 1.0)
    b_hh = jax.random.uniform(k4, (4 * HIDDEN,), jnp.float32, -1.0, 1.0)
    fc_w = jax.random.uniform(k5, (1, HIDDEN), jnp.float32, -1.0, 1.0)
    return (w_ih, w_hh, b_ih, b_hh, fc_w)


if __name__ == "__main__":
    key = jax.random.PRNGKey(0)
    k_x, k_p = jax.random.split(key)

    T, B = 8, 2
    xt = jax.random.normal(k_x, (T, B, INDIM), jnp.float32)   # (seq, batch, indim)
    params = init_params(k_p)

    y = lstmsubmodel2_forward(B, xt, params)
    y = jax.block_until_ready(y)

    y_ref = lstmsubmodel2_ref(xt, params)
    assert y.shape == (B, 1)
    assert jnp.allclose(y, y_ref, atol=1e-4, rtol=1e-4), (y, y_ref)

    print("KERNEL_OK")
</pallas_src>

<mosaic_0001>
module attributes {stable_mosaic.version = 11 : i64} {
  func.func @lstm_fc_kernel(%arg0: i32, %arg1: i32, %arg2: memref<1x8x2x128xf32, #tpu.memory_space<vmem>>, %arg3: memref<4x4xf32, #tpu.memory_space<vmem>>, %arg4: memref<1xf32, #tpu.memory_space<smem>>, %arg5: memref<1x128xf32, #tpu.memory_space<vmem>>, %arg6: memref<1x128xf32, #tpu.memory_space<vmem>>, %arg7: memref<1x128xf32, #tpu.memory_space<vmem>>) attributes {dimension_semantics = [#tpu.dimension_semantics<parallel>, #tpu.dimension_semantics<arbitrary>], iteration_bounds = array<i64: 1, 1>, scalar_prefetch = 0 : i64, scratch_operands = 2 : i64, tpu.core_type = #tpu.core_type<tc>, window_params = [{transform_indices = @transform_0, window_bounds = array<i64: 1, 8, 2, 128>}, {pipeline_mode = #tpu.pipeline_mode<synchronous>, transform_indices = @transform_1, window_bounds = array<i64: 4, 4>}, {transform_indices = @transform_2, window_bounds = array<i64: 1>}, {transform_indices = @transform_3, window_bounds = array<i64: 1, 128>}]} {
    %c0_i32 = arith.constant 0 : i32
    %0 = arith.cmpi eq, %arg1, %c0_i32 : i32
    %1 = arith.extui %0 : i1 to i32
    %c0_i32_0 = arith.constant 0 : i32
    %2 = arith.cmpi ne, %1, %c0_i32_0 : i32
    scf.if %2 {
      %cst_61 = arith.constant 0.000000e+00 : f32
      %280 = vector.broadcast %cst_61 : f32 to vector<1x128xf32>
      %c0_62 = arith.constant 0 : index
      %c0_63 = arith.constant 0 : index
      %281 = vector.load %arg6[%c0_62, %c0_63] : memref<1x128xf32, #tpu.memory_space<vmem>>, vector<1x128xf32>
      tpu.vector_store %arg6[%c0_62, %c0_63], %280 {strides = array<i32>} : memref<1x128xf32, #tpu.memory_space<vmem>>, vector<1x128xf32>,
      %cst_64 = arith.constant 0.000000e+00 : f32
      %282 = vector.broadcast %cst_64 : f32 to vector<1x128xf32>
      %c0_65 = arith.constant 0 : index
      %c0_66 = arith.constant 0 : index
      %283 = vector.load %arg7[%c0_65, %c0_66] : memref<1x128xf32, #tpu.memory_space<vmem>>, vector<1x128xf32>
      tpu.vector_store %arg7[%c0_65, %c0_66], %282 {strides = array<i32>} : memref<1x128xf32, #tpu.memory_space<vmem>>, vector<1x128xf32>,
    } else {
    }
    %c0 = arith.constant 0 : index
    %c0_1 = arith.constant 0 : index
    %3 = vector.load %arg3[%c0, %c0_1] : memref<4x4xf32, #tpu.memory_space<vmem>>, vector<4x4xf32>
    %4 = vector.extract_strided_slice %3 {offsets = [0, 0], sizes = [4, 1], strides = [1, 1]} : vector<4x4xf32> to vector<4x1xf32>
    %5 = vector.shape_cast %4 : vector<4x1xf32> to vector<4x1xf32>
    %6 = vector.broadcast %5 : vector<4x1xf32> to vector<4x128xf32>
    %7 = vector.extract_strided_slice %3 {offsets = [0, 1], sizes = [4, 1], strides = [1, 1]} : vector<4x4xf32> to vector<4x1xf32>
    %8 = vector.shape_cast %7 : vector<4x1xf32> to vector<4x1xf32>
    %9 = vector.broadcast %8 : vector<4x1xf32> to vector<4x128xf32>
    %10 = vector.extract_strided_slice %3 {offsets = [0, 2], sizes = [4, 1], strides = [1, 1]} : vector<4x4xf32> to vector<4x1xf32>
    %11 = vector.shape_cast %10 : vector<4x1xf32> to vector<4x1xf32>
    %12 = vector.broadcast %11 : vector<4x1xf32> to vector<4x128xf32>
    %13 = vector.extract_strided_slice %3 {offsets = [0, 3], sizes = [4, 1], strides = [1, 1]} : vector<4x4xf32> to vector<4x1xf32>
    %14 = vector.shape_cast %13 : vector<4x1xf32> to vector<4x1xf32>
    %15 = vector.broadcast %14 : vector<4x1xf32> to vector<4x128xf32>
    %c0_2 = arith.constant 0 : index
    %16 = memref.load %arg4[%c0_2] : memref<1xf32, #tpu.memory_space<smem>>
    %c0_3 = arith.constant 0 : index
    %c0_4 = arith.constant 0 : index
    %17 = vector.load %arg6[%c0_3, %c0_4] : memref<1x128xf32, #tpu.memory_space<vmem>>, vector<1x128xf32>
    %c0_5 = arith.constant 0 : index
    %c0_6 = arith.constant 0 : index
    %18 = vector.load %arg7[%c0_5, %c0_6] : memref<1x128xf32, #tpu.memory_space<vmem>>, vector<1x128xf32>
    %c0_i32_7 = arith.constant 0 : i32
    %c0_8 = arith.constant 0 : index
    %19 = arith.index_cast %c0_i32_7 : i32 to index
    %c0_9 = arith.constant 0 : index
    %c0_10 = arith.constant 0 : index
    %20 = vector.load %arg2[%c0_8, %19, %c0_9, %c0_10] : memref<1x8x2x128xf32, #tpu.memory_space<vmem>>, vector<1x1x2x128xf32>
    %21 = vector.shape_cast %20 : vector<1x1x2x128xf32> to vector<2x128xf32>
    %22 = vector.extract_strided_slice %21 {offsets = [0, 0], sizes = [1, 128], strides = [1, 1]} : vector<2x128xf32> to vector<1x128xf32>
    %23 = vector.broadcast %22 : vector<1x128xf32> to vector<4x128xf32>
    %24 = arith.mulf %23, %6 : vector<4x128xf32>
    %25 = vector.extract_strided_slice %21 {offsets = [1, 0], sizes = [1, 128], strides = [1, 1]} : vector<2x128xf32> to vector<1x128xf32>
    %26 = vector.broadcast %25 : vector<1x128xf32> to vector<4x128xf32>
    %27 = arith.mulf %26, %9 : vector<4x128xf32>
    %28 = arith.addf %24, %27 : vector<4x128xf32>
    %29 = arith.addf %28, %12 : vector<4x128xf32>
    %30 = vector.broadcast %17 : vector<1x128xf32> to vector<4x128xf32>
    %31 = arith.mulf %30, %15 : vector<4x128xf32>
    %32 = arith.addf %29, %31 : vector<4x128xf32>
    %33 = arith.negf %32 : vector<4x128xf32>
    %34 = math.exp %33 : vector<4x128xf32>
    %cst = arith.constant 1.000000e+00 : f32
    %35 = vector.broadcast %cst : f32 to vector<4x128xf32>
    %36 = arith.addf %35, %34 : vector<4x128xf32>
    %37 = arith.divf %35, %36 : vector<4x128xf32>
    %38 = vector.extract_strided_slice %37 {offsets = [0, 0], sizes = [1, 128], strides = [1, 1]} : vector<4x128xf32> to vector<1x128xf32>
    %39 = vector.extract_strided_slice %37 {offsets = [1, 0], sizes = [1, 128], strides = [1, 1]} : vector<4x128xf32> to vector<1x128xf32>
    %40 = vector.extract_strided_slice %37 {offsets = [2, 0], sizes = [1, 128], strides = [1, 1]} : vector<4x128xf32> to vector<1x128xf32>
    %cst_11 = arith.constant 2.000000e+00 : f32
    %41 = vector.broadcast %cst_11 : f32 to vector<1x128xf32>
    %42 = arith.mulf %40, %41 : vector<1x128xf32>
    %cst_12 = arith.constant 1.000000e+00 : f32
    %43 = vector.broadcast %cst_12 : f32 to vector<1x128xf32>
    %44 = arith.subf %42, %43 : vector<1x128xf32>
    %45 = vector.extract_strided_slice %37 {offsets = [3, 0], sizes = [1, 128], strides = [1, 1]} : vector<4x128xf32> to vector<1x128xf32>
    %46 = arith.mulf %39, %18 : vector<1x128xf32>
    %47 = arith.mulf %38, %44 : vector<1x128xf32>
    %48 = arith.addf %46, %47 : vector<1x128xf32>
    %49 = math.tanh %48 : vector<1x128xf32>
    %50 = arith.mulf %45, %49 : vector<1x128xf32>
    %c1_i32 = arith.constant 1 : i32
    %c0_13 = arith.constant 0 : index
    %51 = arith.index_cast %c1_i32 : i32 to index
    %c0_14 = arith.constant 0 : index
    %c0_15 = arith.constant 0 : index
    %52 = vector.load %arg2[%c0_13, %51, %c0_14, %c0_15] : memref<1x8x2x128xf32, #tpu.memory_space<vmem>>, vector<1x1x2x128xf32>
    %53 = vector.shape_cast %52 : vector<1x1x2x128xf32> to vector<2x128xf32>
    %54 = vector.extract_strided_slice %53 {offsets = [0, 0], sizes = [1, 128], strides = [1, 1]} : vector<2x128xf32> to vector<1x128xf32>
    %55 = vector.broadcast %54 : vector<1x128xf32> to vector<4x128xf32>
    %56 = arith.mulf %55, %6 : vector<4x128xf32>
    %57 = vector.extract_strided_slice %53 {offsets = [1, 0], sizes = [1, 128], strides = [1, 1]} : vector<2x128xf32> to vector<1x128xf32>
    %58 = vector.broadcast %57 : vector<1x128xf32> to vector<4x128xf32>
    %59 = arith.mulf %58, %9 : vector<4x128xf32>
    %60 = arith.addf %56, %59 : vector<4x128xf32>
    %61 = arith.addf %60, %12 : vector<4x128xf32>
    %62 = vector.broadcast %50 : vector<1x128xf32> to vector<4x128xf32>
    %63 = arith.mulf %62, %15 : vector<4x128xf32>
    %64 = arith.addf %61, %63 : vector<4x128xf32>
    %65 = arith.negf %64 : vector<4x128xf32>
    %66 = math.exp %65 : vector<4x128xf32>
    %cst_16 = arith.constant 1.000000e+00 : f32
    %67 = vector.broadcast %cst_16 : f32 to vector<4x128xf32>
    %68 = arith.addf %67, %66 : vector<4x128xf32>
    %69 = arith.divf %67, %68 : vector<4x128xf32>
    %70 = vector.extract_strided_slice %69 {offsets = [0, 0], sizes = [1, 128], strides = [1, 1]} : vector<4x128xf32> to vector<1x128xf32>
    %71 = vector.extract_strided_slice %69 {offsets = [1, 0], sizes = [1, 128], strides = [1, 1]} : vector<4x128xf32> to vector<1x128xf32>
    %72 = vector.extract_strided_slice %69 {offsets = [2, 0], sizes = [1, 128], strides = [1, 1]} : vector<4x128xf32> to vector<1x128xf32>
    %cst_17 = arith.constant 2.000000e+00 : f32
    %73 = vector.broadcast %cst_17 : f32 to vector<1x128xf32>
    %74 = arith.mulf %72, %73 : vector<1x128xf32>
    %cst_18 = arith.constant 1.000000e+00 : f32
    %75 = vector.broadcast %cst_18 : f32 to vector<1x128xf32>
    %76 = arith.subf %74, %75 : vector<1x128xf32>
    %77 = vector.extract_strided_slice %69 {offsets = [3, 0], sizes = [1, 128], strides = [1, 1]} : vector<4x128xf32> to vector<1x128xf32>
    %78 = arith.mulf %71, %48 : vector<1x128xf32>
    %79 = arith.mulf %70, %76 : vector<1x128xf32>
    %80 = arith.addf %78, %79 : vector<1x128xf32>
    %81 = math.tanh %80 : vector<1x128xf32>
    %82 = arith.mulf %77, %81 : vector<1x128xf32>
    %c2_i32 = arith.constant 2 : i32
    %c0_19 = arith.constant 0 : index
    %83 = arith.index_cast %c2_i32 : i32 to index
    %c0_20 = arith.constant 0 : index
    %c0_21 = arith.constant 0 : index
    %84 = vector.load %arg2[%c0_19, %83, %c0_20, %c0_21] : memref<1x8x2x128xf32, #tpu.memory_space<vmem>>, vector<1x1x2x128xf32>
    %85 = vector.shape_cast %84 : vector<1x1x2x128xf32> to vector<2x128xf32>
    %86 = vector.extract_strided_slice %85 {offsets = [0, 0], sizes = [1, 128], strides = [1, 1]} : vector<2x128xf32> to vector<1x128xf32>
    %87 = vector.broadcast %86 : vector<1x128xf32> to vector<4x128xf32>
    %88 = arith.mulf %87, %6 : vector<4x128xf32>
    %89 = vector.extract_strided_slice %85 {offsets = [1, 0], sizes = [1, 128], strides = [1, 1]} : vector<2x128xf32> to vector<1x128xf32>
    %90 = vector.broadcast %89 : vector<1x128xf32> to vector<4x128xf32>
    %91 = arith.mulf %90, %9 : vector<4x128xf32>
    %92 = arith.addf %88, %91 : vector<4x128xf32>
    %93 = arith.addf %92, %12 : vector<4x128xf32>
    %94 = vector.broadcast %82 : vector<1x128xf32> to vector<4x128xf32>
    %95 = arith.mulf %94, %15 : vector<4x128xf32>
    %96 = arith.addf %93, %95 : vector<4x128xf32>
    %97 = arith.negf %96 : vector<4x128xf32>
    %98 = math.exp %97 : vector<4x128xf32>
    %cst_22 = arith.constant 1.000000e+00 : f32
    %99 = vector.broadcast %cst_22 : f32 to vector<4x128xf32>
    %100 = arith.addf %99, %98 : vector<4x128xf32>
    %101 = arith.divf %99, %100 : vector<4x128xf32>
    %102 = vector.extract_strided_slice %101 {offsets = [0, 0], sizes = [1, 128], strides = [1, 1]} : vector<4x128xf32> to vector<1x128xf32>
    %103 = vector.extract_strided_slice %101 {offsets = [1, 0], sizes = [1, 128], strides = [1, 1]} : vector<4x128xf32> to vector<1x128xf32>
    %104 = vector.extract_strided_slice %101 {offsets = [2, 0], sizes = [1, 128], strides = [1, 1]} : vector<4x128xf32> to vector<1x128xf32>
    %cst_23 = arith.constant 2.000000e+00 : f32
    %105 = vector.broadcast %cst_23 : f32 to vector<1x128xf32>
    %106 = arith.mulf %104, %105 : vector<1x128xf32>
    %cst_24 = arith.constant 1.000000e+00 : f32
    %107 = vector.broadcast %cst_24 : f32 to vector<1x128xf32>
    %108 = arith.subf %106, %107 : vector<1x128xf32>
    %109 = vector.extract_strided_slice %101 {offsets = [3, 0], sizes = [1, 128], strides = [1, 1]} : vector<4x128xf32> to vector<1x128xf32>
    %110 = arith.mulf %103, %80 : vector<1x128xf32>
    %111 = arith.mulf %102, %108 : vector<1x128xf32>
    %112 = arith.addf %110, %111 : vector<1x128xf32>
    %113 = math.tanh %112 : vector<1x128xf32>
    %114 = arith.mulf %109, %113 : vector<1x128xf32>
    %c3_i32 = arith.constant 3 : i32
    %c0_25 = arith.constant 0 : index
    %115 = arith.index_cast %c3_i32 : i32 to index
    %c0_26 = arith.constant 0 : index
    %c0_27 = arith.constant 0 : index
    %116 = vector.load %arg2[%c0_25, %115, %c0_26, %c0_27] : memref<1x8x2x128xf32, #tpu.memory_space<vmem>>, vector<1x1x2x128xf32>
    %117 = vector.shape_cast %116 : vector<1x1x2x128xf32> to vector<2x128xf32>
    %118 = vector.extract_strided_slice %117 {offsets = [0, 0], sizes = [1, 128], strides = [1, 1]} : vector<2x128xf32> to vector<1x128xf32>
    %119 = vector.broadcast %118 : vector<1x128xf32> to vector<4x128xf32>
    %120 = arith.mulf %119, %6 : vector<4x128xf32>
    %121 = vector.extract_strided_slice %117 {offsets = [1, 0], sizes = [1, 128], strides = [1, 1]} : vector<2x128xf32> to vector<1x128xf32>
    %122 = vector.broadcast %121 : vector<1x128xf32> to vector<4x128xf32>
    %123 = arith.mulf %122, %9 : vector<4x128xf32>
    %124 = arith.addf %120, %123 : vector<4x128xf32>
    %125 = arith.addf %124, %12 : vector<4x128xf32>
    %126 = vector.broadcast %114 : vector<1x128xf32> to vector<4x128xf32>
    %127 = arith.mulf %126, %15 : vector<4x128xf32>
    %128 = arith.addf %125, %127 : vector<4x128xf32>
    %129 = arith.negf %128 : vector<4x128xf32>
    %130 = math.exp %129 : vector<4x128xf32>
    %cst_28 = arith.constant 1.000000e+00 : f32
    %131 = vector.broadcast %cst_28 : f32 to vector<4x128xf32>
    %132 = arith.addf %131, %130 : vector<4x128xf32>
    %133 = arith.divf %131, %132 : vector<4x128xf32>
    %134 = vector.extract_strided_slice %133 {offsets = [0, 0], sizes = [1, 128], strides = [1, 1]} : vector<4x128xf32> to vector<1x128xf32>
    %135 = vector.extract_strided_slice %133 {offsets = [1, 0], sizes = [1, 128], strides = [1, 1]} : vector<4x128xf32> to vector<1x128xf32>
    %136 = vector.extract_strided_slice %133 {offsets = [2, 0], sizes = [1, 128], strides = [1, 1]} : vector<4x128xf32> to vector<1x128xf32>
    %cst_29 = arith.constant 2.000000e+00 : f32
    %137 = vector.broadcast %cst_29 : f32 to vector<1x128xf32>
    %138 = arith.mulf %136, %137 : vector<1x128xf32>
    %cst_30 = arith.constant 1.000000e+00 : f32
    %139 = vector.broadcast %cst_30 : f32 to vector<1x128xf32>
    %140 = arith.subf %138, %139 : vector<1x128xf32>
    %141 = vector.extract_strided_slice %133 {offsets = [3, 0], sizes = [1, 128], strides = [1, 1]} : vector<4x128xf32> to vector<1x128xf32>
    %142 = arith.mulf %135, %112 : vector<1x128xf32>
    %143 = arith.mulf %134, %140 : vector<1x128xf32>
    %144 = arith.addf %142, %143 : vector<1x128xf32>
    %145 = math.tanh %144 : vector<1x128xf32>
    %146 = arith.mulf %141, %145 : vector<1x128xf32>
    %c4_i32 = arith.constant 4 : i32
    %c0_31 = arith.constant 0 : index
    %147 = arith.index_cast %c4_i32 : i32 to index
    %c0_32 = arith.constant 0 : index
    %c0_33 = arith.constant 0 : index
    %148 = vector.load %arg2[%c0_31, %147, %c0_32, %c0_33] : memref<1x8x2x128xf32, #tpu.memory_space<vmem>>, vector<1x1x2x128xf32>
    %149 = vector.shape_cast %148 : vector<1x1x2x128xf32> to vector<2x128xf32>
    %150 = vector.extract_strided_slice %149 {offsets = [0, 0], sizes = [1, 128], strides = [1, 1]} : vector<2x128xf32> to vector<1x128xf32>
    %151 = vector.broadcast %150 : vector<1x128xf32> to vector<4x128xf32>
    %152 = arith.mulf %151, %6 : vector<4x128xf32>
    %153 = vector.extract_strided_slice %149 {offsets = [1, 0], sizes = [1, 128], strides = [1, 1]} : vector<2x128xf32> to vector<1x128xf32>
    %154 = vector.broadcast %153 : vector<1x128xf32> to vector<4x128xf32>
    %155 = arith.mulf %154, %9 : vector<4x128xf32>
    %156 = arith.addf %152, %155 : vector<4x128xf32>
    %157 = arith.addf %156, %12 : vector<4x128xf32>
    %158 = vector.broadcast %146 : vector<1x128xf32> to vector<4x128xf32>
    %159 = arith.mulf %158, %15 : vector<4x128xf32>
    %160 = arith.addf %157, %159 : vector<4x128xf32>
    %161 = arith.negf %160 : vector<4x128xf32>
    %162 = math.exp %161 : vector<4x128xf32>
    %cst_34 = arith.constant 1.000000e+00 : f32
    %163 = vector.broadcast %cst_34 : f32 to vector<4x128xf32>
    %164 = arith.addf %163, %162 : vector<4x128xf32>
    %165 = arith.divf %163, %164 : vector<4x128xf32>
    %166 = vector.extract_strided_slice %165 {offsets = [0, 0], sizes = [1, 128], strides = [1, 1]} : vector<4x128xf32> to vector<1x128xf32>
    %167 = vector.extract_strided_slice %165 {offsets = [1, 0], sizes = [1, 128], strides = [1, 1]} : vector<4x128xf32> to vector<1x128xf32>
    %168 = vector.extract_strided_slice %165 {offsets = [2, 0], sizes = [1, 128], strides = [1, 1]} : vector<4x128xf32> to vector<1x128xf32>
    %cst_35 = arith.constant 2.000000e+00 : f32
    %169 = vector.broadcast %cst_35 : f32 to vector<1x128xf32>
    %170 = arith.mulf %168, %169 : vector<1x128xf32>
    %cst_36 = arith.constant 1.000000e+00 : f32
    %171 = vector.broadcast %cst_36 : f32 to vector<1x128xf32>
    %172 = arith.subf %170, %171 : vector<1x128xf32>
    %173 = vector.extract_strided_slice %165 {offsets = [3, 0], sizes = [1, 128], strides = [1, 1]} : vector<4x128xf32> to vector<1x128xf32>
    %174 = arith.mulf %167, %144 : vector<1x128xf32>
    %175 = arith.mulf %166, %172 : vector<1x128xf32>
    %176 = arith.addf %174, %175 : vector<1x128xf32>
    %177 = math.tanh %176 : vector<1x128xf32>
    %178 = arith.mulf %173, %177 : vector<1x128xf32>
    %c5_i32 = arith.constant 5 : i32
    %c0_37 = arith.constant 0 : index
    %179 = arith.index_cast %c5_i32 : i32 to index
    %c0_38 = arith.constant 0 : index
    %c0_39 = arith.constant 0 : index
    %180 = vector.load %arg2[%c0_37, %179, %c0_38, %c0_39] : memref<1x8x2x128xf32, #tpu.memory_space<vmem>>, vector<1x1x2x128xf32>
    %181 = vector.shape_cast %180 : vector<1x1x2x128xf32> to vector<2x128xf32>
    %182 = vector.extract_strided_slice %181 {offsets = [0, 0], sizes = [1, 128], strides = [1, 1]} : vector<2x128xf32> to vector<1x128xf32>
    %183 = vector.broadcast %182 : vector<1x128xf32> to vector<4x128xf32>
    %184 = arith.mulf %183, %6 : vector<4x128xf32>
    %185 = vector.extract_strided_slice %181 {offsets = [1, 0], sizes = [1, 128], strides = [1, 1]} : vector<2x128xf32> to vector<1x128xf32>
    %186 = vector.broadcast %185 : vector<1x128xf32> to vector<4x128xf32>
    %187 = arith.mulf %186, %9 : vector<4x128xf32>
    %188 = arith.addf %184, %187 : vector<4x128xf32>
    %189 = arith.addf %188, %12 : vector<4x128xf32>
    %190 = vector.broadcast %178 : vector<1x128xf32> to vector<4x128xf32>
    %191 = arith.mulf %190, %15 : vector<4x128xf32>
    %192 = arith.addf %189, %191 : vector<4x128xf32>
    %193 = arith.negf %192 : vector<4x128xf32>
    %194 = math.exp %193 : vector<4x128xf32>
    %cst_40 = arith.constant 1.000000e+00 : f32
    %195 = vector.broadcast %cst_40 : f32 to vector<4x128xf32>
    %196 = arith.addf %195, %194 : vector<4x128xf32>
    %197 = arith.divf %195, %196 : vector<4x128xf32>
    %198 = vector.extract_strided_slice %197 {offsets = [0, 0], sizes = [1, 128], strides = [1, 1]} : vector<4x128xf32> to vector<1x128xf32>
    %199 = vector.extract_strided_slice %197 {offsets = [1, 0], sizes = [1, 128], strides = [1, 1]} : vector<4x128xf32> to vector<1x128xf32>
    %200 = vector.extract_strided_slice %197 {offsets = [2, 0], sizes = [1, 128], strides = [1, 1]} : vector<4x128xf32> to vector<1x128xf32>
    %cst_41 = arith.constant 2.000000e+00 : f32
    %201 = vector.broadcast %cst_41 : f32 to vector<1x128xf32>
    %202 = arith.mulf %200, %201 : vector<1x128xf32>
    %cst_42 = arith.constant 1.000000e+00 : f32
    %203 = vector.broadcast %cst_42 : f32 to vector<1x128xf32>
    %204 = arith.subf %202, %203 : vector<1x128xf32>
    %205 = vector.extract_strided_slice %197 {offsets = [3, 0], sizes = [1, 128], strides = [1, 1]} : vector<4x128xf32> to vector<1x128xf32>
    %206 = arith.mulf %199, %176 : vector<1x128xf32>
    %207 = arith.mulf %198, %204 : vector<1x128xf32>
    %208 = arith.addf %206, %207 : vector<1x128xf32>
    %209 = math.tanh %208 : vector<1x128xf32>
    %210 = arith.mulf %205, %209 : vector<1x128xf32>
    %c6_i32 = arith.constant 6 : i32
    %c0_43 = arith.constant 0 : index
    %211 = arith.index_cast %c6_i32 : i32 to index
    %c0_44 = arith.constant 0 : index
    %c0_45 = arith.constant 0 : index
    %212 = vector.load %arg2[%c0_43, %211, %c0_44, %c0_45] : memref<1x8x2x128xf32, #tpu.memory_space<vmem>>, vector<1x1x2x128xf32>
    %213 = vector.shape_cast %212 : vector<1x1x2x128xf32> to vector<2x128xf32>
    %214 = vector.extract_strided_slice %213 {offsets = [0, 0], sizes = [1, 128], strides = [1, 1]} : vector<2x128xf32> to vector<1x128xf32>
    %215 = vector.broadcast %214 : vector<1x128xf32> to vector<4x128xf32>
    %216 = arith.mulf %215, %6 : vector<4x128xf32>
    %217 = vector.extract_strided_slice %213 {offsets = [1, 0], sizes = [1, 128], strides = [1, 1]} : vector<2x128xf32> to vector<1x128xf32>
    %218 = vector.broadcast %217 : vector<1x128xf32> to vector<4x128xf32>
    %219 = arith.mulf %218, %9 : vector<4x128xf32>
    %220 = arith.addf %216, %219 : vector<4x128xf32>
    %221 = arith.addf %220, %12 : vector<4x128xf32>
    %222 = vector.broadcast %210 : vector<1x128xf32> to vector<4x128xf32>
    %223 = arith.mulf %222, %15 : vector<4x128xf32>
    %224 = arith.addf %221, %223 : vector<4x128xf32>
    %225 = arith.negf %224 : vector<4x128xf32>
    %226 = math.exp %225 : vector<4x128xf32>
    %cst_46 = arith.constant 1.000000e+00 : f32
    %227 = vector.broadcast %cst_46 : f32 to vector<4x128xf32>
    %228 = arith.addf %227, %226 : vector<4x128xf32>
    %229 = arith.divf %227, %228 : vector<4x128xf32>
    %230 = vector.extract_strided_slice %229 {offsets = [0, 0], sizes = [1, 128], strides = [1, 1]} : vector<4x128xf32> to vector<1x128xf32>
    %231 = vector.extract_strided_slice %229 {offsets = [1, 0], sizes = [1, 128], strides = [1, 1]} : vector<4x128xf32> to vector<1x128xf32>
    %232 = vector.extract_strided_slice %229 {offsets = [2, 0], sizes = [1, 128], strides = [1, 1]} : vector<4x128xf32> to vector<1x128xf32>
    %cst_47 = arith.constant 2.000000e+00 : f32
    %233 = vector.broadcast %cst_47 : f32 to vector<1x128xf32>
    %234 = arith.mulf %232, %233 : vector<1x128xf32>
    %cst_48 = arith.constant 1.000000e+00 : f32
    %235 = vector.broadcast %cst_48 : f32 to vector<1x128xf32>
    %236 = arith.subf %234, %235 : vector<1x128xf32>
    %237 = vector.extract_strided_slice %229 {offsets = [3, 0], sizes = [1, 128], strides = [1, 1]} : vector<4x128xf32> to vector<1x128xf32>
    %238 = arith.mulf %231, %208 : vector<1x128xf32>
    %239 = arith.mulf %230, %236 : vector<1x128xf32>
    %240 = arith.addf %238, %239 : vector<1x128xf32>
    %241 = math.tanh %240 : vector<1x128xf32>
    %242 = arith.mulf %237, %241 : vector<1x128xf32>
    %c7_i32 = arith.constant 7 : i32
    %c0_49 = arith.constant 0 : index
    %243 = arith.index_cast %c7_i32 : i32 to index
    %c0_50 = arith.constant 0 : index
    %c0_51 = arith.constant 0 : index
    %244 = vector.load %arg2[%c0_49, %243, %c0_50, %c0_51] : memref<1x8x2x128xf32, #tpu.memory_space<vmem>>, vector<1x1x2x128xf32>
    %245 = vector.shape_cast %244 : vector<1x1x2x128xf32> to vector<2x128xf32>
    %246 = vector.extract_strided_slice %245 {offsets = [0, 0], sizes = [1, 128], strides = [1, 1]} : vector<2x128xf32> to vector<1x128xf32>
    %247 = vector.broadcast %246 : vector<1x128xf32> to vector<4x128xf32>
    %248 = arith.mulf %247, %6 : vector<4x128xf32>
    %249 = vector.extract_strided_slice %245 {offsets = [1, 0], sizes = [1, 128], strides = [1, 1]} : vector<2x128xf32> to vector<1x128xf32>
    %250 = vector.broadcast %249 : vector<1x128xf32> to vector<4x128xf32>
    %251 = arith.mulf %250, %9 : vector<4x128xf32>
    %252 = arith.addf %248, %251 : vector<4x128xf32>
    %253 = arith.addf %252, %12 : vector<4x128xf32>
    %254 = vector.broadcast %242 : vector<1x128xf32> to vector<4x128xf32>
    %255 = arith.mulf %254, %15 : vector<4x128xf32>
    %256 = arith.addf %253, %255 : vector<4x128xf32>
    %257 = arith.negf %256 : vector<4x128xf32>
    %258 = math.exp %257 : vector<4x128xf32>
    %cst_52 = arith.constant 1.000000e+00 : f32
    %259 = vector.broadcast %cst_52 : f32 to vector<4x128xf32>
    %260 = arith.addf %259, %258 : vector<4x128xf32>
    %261 = arith.divf %259, %260 : vector<4x128xf32>
    %262 = vector.extract_strided_slice %261 {offsets = [0, 0], sizes = [1, 128], strides = [1, 1]} : vector<4x128xf32> to vector<1x128xf32>
    %263 = vector.extract_strided_slice %261 {offsets = [1, 0], sizes = [1, 128], strides = [1, 1]} : vector<4x128xf32> to vector<1x128xf32>
    %264 = vector.extract_strided_slice %261 {offsets = [2, 0], sizes = [1, 128], strides = [1, 1]} : vector<4x128xf32> to vector<1x128xf32>
    %cst_53 = arith.constant 2.000000e+00 : f32
    %265 = vector.broadcast %cst_53 : f32 to vector<1x128xf32>
    %266 = arith.mulf %264, %265 : vector<1x128xf32>
    %cst_54 = arith.constant 1.000000e+00 : f32
    %267 = vector.broadcast %cst_54 : f32 to vector<1x128xf32>
    %268 = arith.subf %266, %267 : vector<1x128xf32>
    %269 = vector.extract_strided_slice %261 {offsets = [3, 0], sizes = [1, 128], strides = [1, 1]} : vector<4x128xf32> to vector<1x128xf32>
    %270 = arith.mulf %263, %240 : vector<1x128xf32>
    %271 = arith.mulf %262, %268 : vector<1x128xf32>
    %272 = arith.addf %270, %271 : vector<1x128xf32>
    %273 = math.tanh %272 : vector<1x128xf32>
    %274 = arith.mulf %269, %273 : vector<1x128xf32>
    %c8_i32 = arith.constant 8 : i32
    %c0_55 = arith.constant 0 : index
    %c0_56 = arith.constant 0 : index
    %275 = vector.load %arg6[%c0_55, %c0_56] : memref<1x128xf32, #tpu.memory_space<vmem>>, vector<1x128xf32>
    tpu.vector_store %arg6[%c0_55, %c0_56], %274 {strides = array<i32>} : memref<1x128xf32, #tpu.memory_space<vmem>>, vector<1x128xf32>,
    %c0_57 = arith.constant 0 : index
    %c0_58 = arith.constant 0 : index
    %276 = vector.load %arg7[%c0_57, %c0_58] : memref<1x128xf32, #tpu.memory_space<vmem>>, vector<1x128xf32>
    tpu.vector_store %arg7[%c0_57, %c0_58], %272 {strides = array<i32>} : memref<1x128xf32, #tpu.memory_space<vmem>>, vector<1x128xf32>,
    %c0_i32_59 = arith.constant 0 : i32
    %277 = arith.cmpi eq, %arg1, %c0_i32_59 : i32
    %278 = arith.extui %277 : i1 to i32
    %c0_i32_60 = arith.constant 0 : i32
    %279 = arith.cmpi ne, %278, %c0_i32_60 : i32
    scf.if %279 {
      %280 = vector.broadcast %16 : f32 to vector<1x128xf32>
      %281 = arith.mulf %274, %280 : vector<1x128xf32>
      %c0_61 = arith.constant 0 : index
      %c0_62 = arith.constant 0 : index
      %282 = vector.load %arg5[%c0_61, %c0_62] : memref<1x128xf32, #tpu.memory_space<vmem>>, vector<1x128xf32>
      tpu.vector_store %arg5[%c0_61, %c0_62], %281 {strides = array<i32>} : memref<1x128xf32, #tpu.memory_space<vmem>>, vector<1x128xf32>,
    } else {
    }
    return
  }
  func.func @transform_0(%arg0: i32, %arg1: i32) -> (i32, i32, i32, i32) {
    %c0_i32 = arith.constant 0 : i32
    %c0_i32_0 = arith.constant 0 : i32
    %c0_i32_1 = arith.constant 0 : i32
    return %arg0, %arg1, %c0_i32, %c0_i32_0 : i32, i32, i32, i32
  }
  func.func @transform_1(%arg0: i32, %arg1: i32) -> (i32, i32) {
    %c0_i32 = arith.constant 0 : i32
    %c0_i32_0 = arith.constant 0 : i32
    %c0_i32_1 = arith.constant 0 : i32
    return %c0_i32, %c0_i32_0 : i32, i32
  }
  func.func @transform_2(%arg0: i32, %arg1: i32) -> i32 {
    %c0_i32 = arith.constant 0 : i32
    %c0_i32_0 = arith.constant 0 : i32
    return %c0_i32 : i32
  }
  func.func @transform_3(%arg0: i32, %arg1: i32) -> (i32, i32) {
    %c0_i32 = arith.constant 0 : i32
    %c0_i32_0 = arith.constant 0 : i32
    return %c0_i32, %arg0 : i32, i32
  }
}

</mosaic_0001>

<llo_original>
// kernel: tpu_custom_call.1
$region0: #{tpu_custom_call.1}
  #allocation0 [shape = 'u32[]', space=smem, size = 0x4, offset = 0x4, fixed_abs, tag = 'smem constant byte address 0x4 - core index']
  #allocation1 [shape = 'u32[72,128]{1,0:T(1,128)}', space=vmem, size = 0x9000, scoped, tag = 'internal scratch']
  #allocation2 [shape = 'f32[1,128]{1,0:T(1,128)}', space=vmem, size = 0x200, scoped, tag = 'scratch operand']
  #allocation3 [shape = 'f32[1,128]{1,0:T(1,128)}', space=vmem, size = 0x200, scoped, tag = 'scratch operand']
  #allocation4 [shape = 'f32[1]{0:T(128)S(6)}', space=smem, size = 0x200, scoped, tag = 'scoped memory for tpu_custom_call.1']
  %s0 = inlined_call_operand.hbm [shape: f32[1,8,2,128], index: 0, kind: input, shape index: {}]
  %s1 = inlined_call_operand.hbm [shape: f32[4,4], index: 1, kind: input, shape index: {}]
  %s2 = inlined_call_operand.<no memory space> [shape: f32[1], index: 2, kind: input, shape index: {}]
  %s3 = inlined_call_operand.hbm [shape: f32[1,128], index: 3, kind: output, shape index: {}]
  %s4 = sld [smem:[#allocation0]]
  $region38: #{tpu_custom_call.1} parent=0
    _
  %s6 = ssub.s32 1, %s4
  %s7 = scalar_select 0, %s6, %s4
  %8 = sst [smem:[#allocation4]] %s2
  $region1: #{tpu_custom_call.1} parent=0
    #allocation5 [shape = 'u8[8192]{0}', space=vmem, size = 0x2000, scoped, tag = 'input window, operand 0, single buffered']
    #allocation6 [shape = 's32[1]{0}', space=sflag, size = 0x4, scoped, tag = 'scoped memory for tpu_custom_call.1']
    #allocation7 [shape = 's32[1]{0}', space=sflag, size = 0x4, scoped, tag = 'scoped memory for tpu_custom_call.1']
    #allocation8 [shape = 'u8[2048]{0}', space=vmem, size = 0x800, scoped, tag = 'input window, operand 1, single buffered']
    #allocation9 [shape = 's32[1]{0}', space=sflag, size = 0x4, scoped, tag = 'scoped memory for tpu_custom_call.1']
    #allocation10 [shape = 'u8[512]{0}', space=vmem, size = 0x400, scoped, tag = 'output window, operand 0, single buffered']
    %9 = vsyncpa [#allocation6], 0
    %10 = vsyncpa [#allocation9], 0
    %11 = vsyncpa [#allocation7], 0
    // Predicated region
    $region2: #{tpu_custom_call.1} parent=1 // pred_check
      _
    $region3: #{tpu_custom_call.1} parent=1 // pred_check_branch
      %13 = sbr.rel (0) target = $region5
    $region4: #{tpu_custom_call.1} parent=1 // pred_region
      %15 = vsyncadd [#allocation6], 0
      %s16 = sshll.u32 %s0, 4
      %s17 = int_to_ptr.hbm [resolvable:$true] %s16
      %s18 = sshll.u32 [#allocation5], 4
      %s19 = int_to_ptr.vmem [resolvable:$true] %s18
      %24 = dma.hbm_to_vmem [thread:$0]  %s17, 256, %s19, [#allocation6], 32, 32, 2
    $region5: #{tpu_custom_call.1} parent=1 // pred_fallthru
      _
    // Predicated region
    $region6: #{tpu_custom_call.1} parent=1 // pred_check
      _
    $region7: #{tpu_custom_call.1} parent=1 // pred_check_branch
      %26 = sbr.rel (0) target = $region9
    $region8: #{tpu_custom_call.1} parent=1 // pred_region
      %28 = vsyncadd [#allocation9], 0
      %s30 = sshll.u32 %s1, 4
      %s31 = int_to_ptr.hbm [resolvable:$true] %s30
      %s32 = sshll.u32 [#allocation8], 4
      %s33 = int_to_ptr.vmem [resolvable:$true] %s32
      %35 = dma.hbm_to_vmem [thread:$0]  %s31, 64, %s33, [#allocation9]
    $region9: #{tpu_custom_call.1} parent=1 // pred_fallthru
      _
    // Predicated region
    $region10: #{tpu_custom_call.1} parent=1 // pred_check
      _
    $region11: #{tpu_custom_call.1} parent=1 // pred_check_branch
      %37 = sbr.rel (0) target = $region13
    $region12: #{tpu_custom_call.1} parent=1 // pred_region
      _
    $region13: #{tpu_custom_call.1} parent=1 // pred_fallthru
      _
    // Predicated region
    $region14: #{tpu_custom_call.1} parent=1 // pred_check
      _
    $region15: #{tpu_custom_call.1} parent=1 // pred_check_branch
      %39 = sbr.rel (0) target = $region17
    $region16: #{tpu_custom_call.1} parent=1 // pred_region
      %41 = dma.done [#allocation6], 256
    $region17: #{tpu_custom_call.1} parent=1 // pred_fallthru
      _
    // Predicated region
    $region18: #{tpu_custom_call.1} parent=1 // pred_check
      _
    $region19: #{tpu_custom_call.1} parent=1 // pred_check_branch
      %43 = sbr.rel (0) target = $region21
    $region20: #{tpu_custom_call.1} parent=1 // pred_region
      %45 = dma.done [#allocation9], 64
    $region21: #{tpu_custom_call.1} parent=1 // pred_fallthru
      _
    %p46 = scmp.eq.s32.totalorder 0, 0
    // Predicated region
    $region22: #{tpu_custom_call.1} parent=1 // pred_check
      %p47 = pneg %p46
    $region23: #{tpu_custom_call.1} parent=1 // pred_check_branch
      %49 = sbr.rel (%p47) target = $region25
    $region24: #{tpu_custom_call.1} parent=1 // pred_region
      %50 = vst [vmem:[#allocation2] sm:$0x1] 0.0
      %51 = vst [vmem:[#allocation3] sm:$0x1] 0.0
    $region25: #{tpu_custom_call.1} parent=1 // pred_fallthru
      _
    %v52 = vld [vmem:[#allocation8] sm:$0xf]
    %54 = vset.pattern.permute.xlu0 0
    %55 = vperm.xlu0 %54, %v52
    %v56 = vpop.permute.xlu0 %55
    %58 = vset.pattern.permute.xlu0 1
    %59 = vperm.xlu0 %58, %v52
    %v60 = vpop.permute.xlu0 %59
    %62 = vset.pattern.permute.xlu0 2
    %63 = vperm.xlu0 %62, %v52
    %v64 = vpop.permute.xlu0 %63
    %66 = vset.pattern.permute.xlu0 3
    %67 = vperm.xlu0 %66, %v52
    %v68 = vpop.permute.xlu0 %67
    %s70 = sld [smem:[#allocation4]]
    %v71 = vld [vmem:[#allocation2] sm:$0x1]
    %v72 = vld [vmem:[#allocation3] sm:$0x1]
    %v73 = vld [vmem:[#allocation5] sm:$0x3]
    %v74 = vperm.slane %v73, 0
    %v75 = vmul.f32 %v74, %v56
    %v76 = vperm.slane %v73, 1
    %v77 = vmul.f32 %v76, %v60
    %v78 = vadd.f32 %v75, %v77
    %v79 = vadd.f32 %v78, %v64
    %v81 = vperm.slane %v71, 0
    %v83 = vmul.f32 %v81, %v68
    %v84 = vadd.f32 %v79, %v83
    %v85 = vxor.u32 %v84, 2147483648
    %v86 = vmul.f32 %v85, 1.442695
    %v87 = vpow.pop %v86
    %v88 = vadd.f32 %v87, 1.0
    %v89 = vrcp.pop %v88
    %v90 = vmul.f32 %v88, %v89
    %v91 = vsub.f32 1.0, %v90
    %v92 = vmul.f32 %v89, %v91
    %v93 = vadd.f32 %v89, %v92
    %vm94 = vweird.f32 %v88
    %vm95 = vweird.f32 %v89
    %vm96 = vmor %vm94, %vm95
    %v97 = vsel %vm96, %v89, %v93
    %v98 = vand.u32 2147483647, %v88
    %vm99 = vcmp.eq.f32.partialorder %v98, 8.507059e+37
    %v100 = vand.u32 %v88, 2147483648
    %v101 = vor.u32 1.1754944e-38, %v100
    %v102 = vsel %vm99, %v101, %v97
    %v103 = vmul.f32 1.0, %v102
    %v104 = vmul.f32 %v103, 2.0
    %v105 = vsub.f32 %v104, 1.0
    %v107 = vperm.slane %v72, 0
    %v109 = vmul.f32 %v103, %v107
    %v111 = vrot.slane %v105, 2
    %v113 = vmul.f32 %v103, %v111
    %v115 = vrot.slane %v113, 7
    %v117 = vadd.f32 %v109, %v115
    %v118 = vtanh.pop %v117
    %v120 = vrot.slane %v118, 6
    %v122 = vmul.f32 %v103, %v120
    %s123 = scalar_lea.vmem [#allocation5], 2
    %v124 = vld [vmem:[%s123] sm:$0x3]
    %v125 = vperm.slane %v124, 0
    %v126 = vmul.f32 %v125, %v56
    %v127 = vperm.slane %v124, 1
    %v128 = vmul.f32 %v127, %v60
    %v129 = vadd.f32 %v126, %v128
    %v130 = vadd.f32 %v129, %v64
    %v131 = vperm.slane %v122, 3
    %v132 = vmul.f32 %v131, %v68
    %v133 = vadd.f32 %v130, %v132
    %v134 = vxor.u32 %v133, 2147483648
    %v135 = vmul.f32 %v134, 1.442695
    %v136 = vpow.pop %v135
    %v137 = vadd.f32 %v136, 1.0
    %v138 = vrcp.pop %v137
    %v139 = vmul.f32 %v137, %v138
    %v140 = vsub.f32 1.0, %v139
    %v141 = vmul.f32 %v138, %v140
    %v142 = vadd.f32 %v138, %v141
    %vm143 = vweird.f32 %v137
    %vm144 = vweird.f32 %v138
    %vm145 = vmor %vm143, %vm144
    %v146 = vsel %vm145, %v138, %v142
    %v147 = vand.u32 2147483647, %v137
    %vm148 = vcmp.eq.f32.partialorder %v147, 8.507059e+37
    %v149 = vand.u32 %v137, 2147483648
    %v150 = vor.u32 1.1754944e-38, %v149
    %v151 = vsel %vm148, %v150, %v146
    %v152 = vmul.f32 1.0, %v151
    %v153 = vmul.f32 %v152, 2.0
    %v154 = vsub.f32 %v153, 1.0
    %v155 = vmul.f32 %v152, %v117
    %v157 = vrot.slane %v154, 2
    %v159 = vmul.f32 %v152, %v157
    %v161 = vrot.slane %v159, 7
    %v163 = vadd.f32 %v155, %v161
    %v164 = vtanh.pop %v163
    %v166 = vrot.slane %v164, 6
    %v168 = vmul.f32 %v152, %v166
    %s169 = scalar_lea.vmem [#allocation5], 4
    %v170 = vld [vmem:[%s169] sm:$0x3]
    %v171 = vperm.slane %v170, 0
    %v172 = vmul.f32 %v171, %v56
    %v173 = vperm.slane %v170, 1
    %v174 = vmul.f32 %v173, %v60
    %v175 = vadd.f32 %v172, %v174
    %v176 = vadd.f32 %v175, %v64
    %v177 = vperm.slane %v168, 3
    %v178 = vmul.f32 %v177, %v68
    %v179 = vadd.f32 %v176, %v178
    %v180 = vxor.u32 %v179, 2147483648
    %v181 = vmul.f32 %v180, 1.442695
    %v182 = vpow.pop %v181
    %v183 = vadd.f32 %v182, 1.0
    %v184 = vrcp.pop %v183
    %v185 = vmul.f32 %v183, %v184
    %v186 = vsub.f32 1.0, %v185
    %v187 = vmul.f32 %v184, %v186
    %v188 = vadd.f32 %v184, %v187
    %vm189 = vweird.f32 %v183
    %vm190 = vweird.f32 %v184
    %vm191 = vmor %vm189, %vm190
    %v192 = vsel %vm191, %v184, %v188
    %v193 = vand.u32 2147483647, %v183
    %vm194 = vcmp.eq.f32.partialorder %v193, 8.507059e+37
    %v195 = vand.u32 %v183, 2147483648
    %v196 = vor.u32 1.1754944e-38, %v195
    %v197 = vsel %vm194, %v196, %v192
    %v198 = vmul.f32 1.0, %v197
    %v199 = vmul.f32 %v198, 2.0
    %v200 = vsub.f32 %v199, 1.0
    %v201 = vmul.f32 %v198, %v163
    %v203 = vrot.slane %v200, 2
    %v205 = vmul.f32 %v198, %v203
    %v207 = vrot.slane %v205, 7
    %v209 = vadd.f32 %v201, %v207
    %v210 = vtanh.pop %v209
    %v212 = vrot.slane %v210, 6
    %v214 = vmul.f32 %v198, %v212
    %s215 = scalar_lea.vmem [#allocation5], 6
    %v216 = vld [vmem:[%s215] sm:$0x3]
    %v217 = vperm.slane %v216, 0
    %v218 = vmul.f32 %v217, %v56
    %v219 = vperm.slane %v216, 1
    %v220 = vmul.f32 %v219, %v60
    %v221 = vadd.f32 %v218, %v220
    %v222 = vadd.f32 %v221, %v64
    %v223 = vperm.slane %v214, 3
    %v224 = vmul.f32 %v223, %v68
    %v225 = vadd.f32 %v222, %v224
    %v226 = vxor.u32 %v225, 2147483648
    %v227 = vmul.f32 %v226, 1.442695
    %v228 = vpow.pop %v227
    %v229 = vadd.f32 %v228, 1.0
    %v230 = vrcp.pop %v229
    %v231 = vmul.f32 %v229, %v230
    %v232 = vsub.f32 1.0, %v231
    %v233 = vmul.f32 %v230, %v232
    %v234 = vadd.f32 %v230, %v233
    %vm235 = vweird.f32 %v229
    %vm236 = vweird.f32 %v230
    %vm237 = vmor %vm235, %vm236
    %v238 = vsel %vm237, %v230, %v234
    %v239 = vand.u32 2147483647, %v229
    %vm240 = vcmp.eq.f32.partialorder %v239, 8.507059e+37
    %v241 = vand.u32 %v229, 2147483648
    %v242 = vor.u32 1.1754944e-38, %v241
    %v243 = vsel %vm240, %v242, %v238
    %v244 = vmul.f32 1.0, %v243
    %v245 = vmul.f32 %v244, 2.0
    %v246 = vsub.f32 %v245, 1.0
    %v247 = vmul.f32 %v244, %v209
    %v249 = vrot.slane %v246, 2
    %v251 = vmul.f32 %v244, %v249
    %v253 = vrot.slane %v251, 7
    %v255 = vadd.f32 %v247, %v253
    %v256 = vtanh.pop %v255
    %v258 = vrot.slane %v256, 6
    %v260 = vmul.f32 %v244, %v258
    %s261 = scalar_lea.vmem [#allocation5], 8
    %v262 = vld [vmem:[%s261] sm:$0x3]
    %v263 = vperm.slane %v262, 0
    %v264 = vmul.f32 %v263, %v56
    %v265 = vperm.slane %v262, 1
    %v266 = vmul.f32 %v265, %v60
    %v267 = vadd.f32 %v264, %v266
    %v268 = vadd.f32 %v267, %v64
    %v269 = vperm.slane %v260, 3
    %v270 = vmul.f32 %v269, %v68
    %v271 = vadd.f32 %v268, %v270
    %v272 = vxor.u32 %v271, 2147483648
    %v273 = vmul.f32 %v272, 1.442695
    %v274 = vpow.pop %v273
    %v275 = vadd.f32 %v274, 1.0
    %v276 = vrcp.pop %v275
    %v277 = vmul.f32 %v275, %v276
    %v278 = vsub.f32 1.0, %v277
    %v279 = vmul.f32 %v276, %v278
    %v280 = vadd.f32 %v276, %v279
    %vm281 = vweird.f32 %v275
    %vm282 = vweird.f32 %v276
    %vm283 = vmor %vm281, %vm282
    %v284 = vsel %vm283, %v276, %v280
    %v285 = vand.u32 2147483647, %v275
    %vm286 = vcmp.eq.f32.partialorder %v285, 8.507059e+37
    %v287 = vand.u32 %v275, 2147483648
    %v288 = vor.u32 1.1754944e-38, %v287
    %v289 = vsel %vm286, %v288, %v284
    %v290 = vmul.f32 1.0, %v289
    %v291 = vmul.f32 %v290, 2.0
    %v292 = vsub.f32 %v291, 1.0
    %v293 = vmul.f32 %v290, %v255
    %v295 = vrot.slane %v292, 2
    %v297 = vmul.f32 %v290, %v295
    %v299 = vrot.slane %v297, 7
    %v301 = vadd.f32 %v293, %v299
    %v302 = vtanh.pop %v301
    %v304 = vrot.slane %v302, 6
    %v306 = vmul.f32 %v290, %v304
    %s307 = scalar_lea.vmem [#allocation5], 10
    %v308 = vld [vmem:[%s307] sm:$0x3]
    %v309 = vperm.slane %v308, 0
    %v310 = vmul.f32 %v309, %v56
    %v311 = vperm.slane %v308, 1
    %v312 = vmul.f32 %v311, %v60
    %v313 = vadd.f32 %v310, %v312
    %v314 = vadd.f32 %v313, %v64
    %v315 = vperm.slane %v306, 3
    %v316 = vmul.f32 %v315, %v68
    %v317 = vadd.f32 %v314, %v316
    %v318 = vxor.u32 %v317, 2147483648
    %v319 = vmul.f32 %v318, 1.442695
    %v320 = vpow.pop %v319
    %v321 = vadd.f32 %v320, 1.0
    %v322 = vrcp.pop %v321
    %v323 = vmul.f32 %v321, %v322
    %v324 = vsub.f32 1.0, %v323
    %v325 = vmul.f32 %v322, %v324
    %v326 = vadd.f32 %v322, %v325
    %vm327 = vweird.f32 %v321
    %vm328 = vweird.f32 %v322
    %vm329 = vmor %vm327, %vm328
    %v330 = vsel %vm329, %v322, %v326
    %v331 = vand.u32 2147483647, %v321
    %vm332 = vcmp.eq.f32.partialorder %v331, 8.507059e+37
    %v333 = vand.u32 %v321, 2147483648
    %v334 = vor.u32 1.1754944e-38, %v333
    %v335 = vsel %vm332, %v334, %v330
    %v336 = vmul.f32 1.0, %v335
    %v337 = vmul.f32 %v336, 2.0
    %v338 = vsub.f32 %v337, 1.0
    %v339 = vmul.f32 %v336, %v301
    %v341 = vrot.slane %v338, 2
    %v343 = vmul.f32 %v336, %v341
    %v345 = vrot.slane %v343, 7
    %v347 = vadd.f32 %v339, %v345
    %v348 = vtanh.pop %v347
    %v350 = vrot.slane %v348, 6
    %v352 = vmul.f32 %v336, %v350
    %s353 = scalar_lea.vmem [#allocation5], 12
    %v354 = vld [vmem:[%s353] sm:$0x3]
    %v355 = vperm.slane %v354, 0
    %v356 = vmul.f32 %v355, %v56
    %v357 = vperm.slane %v354, 1
    %v358 = vmul.f32 %v357, %v60
    %v359 = vadd.f32 %v356, %v358
    %v360 = vadd.f32 %v359, %v64
    %v361 = vperm.slane %v352, 3
    %v362 = vmul.f32 %v361, %v68
    %v363 = vadd.f32 %v360, %v362
    %v364 = vxor.u32 %v363, 2147483648
    %v365 = vmul.f32 %v364, 1.442695
    %v366 = vpow.pop %v365
    %v367 = vadd.f32 %v366, 1.0
    %v368 = vrcp.pop %v367
    %v369 = vmul.f32 %v367, %v368
    %v370 = vsub.f32 1.0, %v369
    %v371 = vmul.f32 %v368, %v370
    %v372 = vadd.f32 %v368, %v371
    %vm373 = vweird.f32 %v367
    %vm374 = vweird.f32 %v368
    %vm375 = vmor %vm373, %vm374
    %v376 = vsel %vm375, %v368, %v372
    %v377 = vand.u32 2147483647, %v367
    %vm378 = vcmp.eq.f32.partialorder %v377, 8.507059e+37
    %v379 = vand.u32 %v367, 2147483648
    %v380 = vor.u32 1.1754944e-38, %v379
    %v381 = vsel %vm378, %v380, %v376
    %v382 = vmul.f32 1.0, %v381
    %v383 = vmul.f32 %v382, 2.0
    %v384 = vsub.f32 %v383, 1.0
    %v385 = vmul.f32 %v382, %v347
    %v387 = vrot.slane %v384, 2
    %v389 = vmul.f32 %v382, %v387
    %v391 = vrot.slane %v389, 7
    %v393 = vadd.f32 %v385, %v391
    %v394 = vtanh.pop %v393
    %v396 = vrot.slane %v394, 6
    %v398 = vmul.f32 %v382, %v396
    %s399 = scalar_lea.vmem [#allocation5], 14
    %v400 = vld [vmem:[%s399] sm:$0x3]
    %v401 = vperm.slane %v400, 0
    %v402 = vmul.f32 %v401, %v56
    %v403 = vperm.slane %v400, 1
    %v404 = vmul.f32 %v403, %v60
    %v405 = vadd.f32 %v402, %v404
    %v406 = vadd.f32 %v405, %v64
    %v407 = vperm.slane %v398, 3
    %v408 = vmul.f32 %v407, %v68
    %v409 = vadd.f32 %v406, %v408
    %v410 = vxor.u32 %v409, 2147483648
    %v411 = vmul.f32 %v410, 1.442695
    %v412 = vpow.pop %v411
    %v413 = vadd.f32 %v412, 1.0
    %v414 = vrcp.pop %v413
    %v415 = vmul.f32 %v413, %v414
    %v416 = vsub.f32 1.0, %v415
    %v417 = vmul.f32 %v414, %v416
    %v418 = vadd.f32 %v414, %v417
    %vm419 = vweird.f32 %v413
    %vm420 = vweird.f32 %v414
    %vm421 = vmor %vm419, %vm420
    %v422 = vsel %vm421, %v414, %v418
    %v423 = vand.u32 2147483647, %v413
    %vm424 = vcmp.eq.f32.partialorder %v423, 8.507059e+37
    %v425 = vand.u32 %v413, 2147483648
    %v426 = vor.u32 1.1754944e-38, %v425
    %v427 = vsel %vm424, %v426, %v422
    %v428 = vmul.f32 1.0, %v427
    %v429 = vmul.f32 %v428, 2.0
    %v430 = vsub.f32 %v429, 1.0
    %v431 = vmul.f32 %v428, %v393
    %v433 = vrot.slane %v430, 2
    %v435 = vmul.f32 %v428, %v433
    %v437 = vrot.slane %v435, 7
    %v439 = vadd.f32 %v431, %v437
    %v440 = vtanh.pop %v439
    %v442 = vrot.slane %v440, 6
    %v444 = vmul.f32 %v428, %v442
    %445 = vst [vmem:[#allocation2 - $0x3] sm:$0x8] %v444
    %446 = vst [vmem:[#allocation3 - $0x1] sm:$0x2] %v439
    // Predicated region
    $region26: #{tpu_custom_call.1} parent=1 // pred_check
      %p447 = pneg %p46
    $region27: #{tpu_custom_call.1} parent=1 // pred_check_branch
      %449 = sbr.rel (%p447) target = $region29
    $region28: #{tpu_custom_call.1} parent=1 // pred_region
      %v450 = vstv %s70
      %v451 = vmul.f32 %v444, %v450
      %452 = vst [vmem:[#allocation10 - $0x3] sm:$0x8] %v451
    $region29: #{tpu_custom_call.1} parent=1 // pred_fallthru
      _
    // Predicated region
    $region30: #{tpu_custom_call.1} parent=1 // pred_check
      _
    $region31: #{tpu_custom_call.1} parent=1 // pred_check_branch
      %454 = sbr.rel (0) target = $region33
    $region32: #{tpu_custom_call.1} parent=1 // pred_region
      %456 = vsyncadd [#allocation7], 0
      %s458 = sshll.u32 [#allocation10], 4
      %s459 = int_to_ptr.vmem [resolvable:$true] %s458
      %s460 = sshll.u32 %s3, 4
      %s461 = int_to_ptr.hbm [resolvable:$true] %s460
      %463 = dma.vmem_to_hbm [thread:$0]  %s459, 16, %s461, [#allocation7]
    $region33: #{tpu_custom_call.1} parent=1 // pred_fallthru
      _
    // Predicated region
    $region34: #{tpu_custom_call.1} parent=1 // pred_check
      _
    $region35: #{tpu_custom_call.1} parent=1 // pred_check_branch
      %465 = sbr.rel (0) target = $region37
    $region36: #{tpu_custom_call.1} parent=1 // pred_region
      %467 = dma.done [#allocation7], 16
    $region37: #{tpu_custom_call.1} parent=1 // pred_fallthru
      _
    %468 = vsyncpa [#allocation6], 1
    %469 = vsyncpa [#allocation9], 1
    %470 = vsyncpa [#allocation7], 1

</llo_original>
